<compile_context>
chip_gen: v7x
topology: tpu7x:2x2x1
jax: 0.10.0
libtpu: 0.0.40
codegen_flags: <defaults>
</compile_context>

<pallas_src>
import jax
import jax.numpy as jnp
from jax.experimental import pallas as pl
from jax.experimental.pallas import tpu as pltpu


LANE = 128          # TPU lane width
TN_MAX = 2048       # per-grid-step lane tile (keeps the (H, TN) f32 intermediate small)


def mlp_kernel(params_ref, b2_ref, x_ref, o_ref):
    # params_ref: (H, 3)  fused [w1 | b1 | w2] columns        (VMEM)
    # b2_ref    : (1,)    l2 bias scalar                      (SMEM)
    # x_ref     : (1, TN) batch tile, batch in lanes          (VMEM)
    # o_ref     : (1, TN) output tile, batch in lanes         (VMEM)
    w1 = params_ref[:, 0:1]   # (H, 1)
    b1 = params_ref[:, 1:2]   # (H, 1)
    w2 = params_ref[:, 2:3]   # (H, 1)

    # Layer 1 + tanh: (H,1) * (1,TN) broadcast -> (H,TN); VPU mul/add, EUP tanh.
    h = jnp.tanh(w1 * x_ref[...] + b1)

    # Layer 2: weighted sum over the hidden (sublane) axis -> (1, TN); VPU + XLU.
    # TODO(synk): if the XLU/EUP slots ever bind at very large tiles, move this
    # contraction onto the (idle) MXU and/or use a bf16 tanh on v6e/v7x.
    y = jnp.sum(w2 * h, axis=0, keepdims=True)

    # Scalar bias from SMEM, lane-dense store.
    o_ref[...] = (y + b2_ref[0]).astype(o_ref.dtype)


def _round_up(n, m):
    return (n + m - 1) // m * m


def nn_forward(x, w1, b1, w2, b2):
    """Forward pass of NN (tanh MLP) with D_in == D_out == 1.

    x : (N, 1)  float32
    w1: (H, 1)  float32   (PyTorch l1.weight layout, in_dim = 1)
    b1: (H,)    float32
    w2: (1, H)  float32   (PyTorch l2.weight layout, out_dim = 1)
    b2: (1,)    float32
    returns (N, 1) float32
    """
    N, d_in = x.shape
    H = w1.shape[0]
    d_out = w2.shape[0]
    assert d_in == 1 and d_out == 1, "kernel is specialized for scalar in/out"

    # --- lane-dense re-layout + padding (pure reshapes / one pad in the wrapper) ---
    n_pad_lane = _round_up(max(N, 1), LANE)      # multiple of 128 lanes
    tn = min(TN_MAX, n_pad_lane)                 # per-step lane tile (multiple of 128)
    n_pad = _round_up(n_pad_lane, tn)
    n_blocks = n_pad // tn

    x_row = x.reshape(1, N)
    if n_pad != N:
        x_row = jnp.pad(x_row, ((0, 0), (0, n_pad - N)))

    # Fuse the three (H,)-sized parameters into one (H, 3) VMEM array: 1 DMA not 3.
    params = jnp.stack(
        [w1.reshape(H), b1.reshape(H), w2.reshape(H)], axis=1
    ).astype(jnp.float32)                        # (H, 3)
    b2_s = b2.reshape(1).astype(jnp.float32)     # 1-D SMEM scalar

    flops = 2 * n_pad * (d_in * H + H * d_out)
    bytes_accessed = 4 * (n_pad + params.size + b2_s.size + n_pad * d_out)

    out_row = pl.pallas_call(
        mlp_kernel,
        out_shape=jax.ShapeDtypeStruct((1, n_pad), x.dtype),
        grid=(n_blocks,),
        in_specs=[
            pl.BlockSpec((H, 3), lambda i: (0, 0)),                    # fused params (VMEM)
            pl.BlockSpec(memory_space=pltpu.MemorySpace.SMEM),         # b2 scalar (SMEM)
            pl.BlockSpec((1, tn), lambda i: (0, i)),                   # x tile (VMEM)
        ],
        out_specs=pl.BlockSpec((1, tn), lambda i: (0, i)),             # y tile (VMEM)
        compiler_params=pltpu.CompilerParams(
            dimension_semantics=("parallel",),                         # 2 TCs on v7x
        ),
        cost_estimate=pl.CostEstimate(
            flops=flops,
            transcendentals=n_pad * H,          # tanh
            bytes_accessed=bytes_accessed,
        ),
    )(params, b2_s, x_row)

    # Drop the lane padding; back to PyTorch's (N, 1) output layout.
    return out_row[:, :N].reshape(N, d_out)


if __name__ == "__main__":
    # DemBar1D-style sizes: 1D bar coordinate in, scalar displacement out.
    batch, input_dim, hidden_dim, output_dim = 16, 1, 32, 1

    key = jax.random.PRNGKey(0)
    kx, k1, k2, k3, k4 = jax.random.split(key, 5)

    x = jax.random.normal(kx, (batch, input_dim), dtype=jnp.float32)

    # Deterministic synthetic parameters in PyTorch nn.Linear layout:
    #   weight (out_features, in_features), bias (out_features,)
    w1 = jax.random.normal(k1, (hidden_dim, input_dim), dtype=jnp.float32) * 0.5
    b1 = jax.random.normal(k2, (hidden_dim,), dtype=jnp.float32) * 0.1
    w2 = jax.random.normal(k3, (output_dim, hidden_dim), dtype=jnp.float32) * 0.5
    b2 = jax.random.normal(k4, (output_dim,), dtype=jnp.float32) * 0.1

    out = nn_forward(x, w1, b1, w2, b2)
    out = jax.block_until_ready(out)

    # Pure-JAX reference of the PyTorch forward: y = tanh(x @ W1^T + b1) @ W2^T + b2
    ref = jnp.dot(jnp.tanh(jnp.dot(x, w1.T) + b1), w2.T) + b2
    assert out.shape == (batch, output_dim)
    assert jnp.allclose(out, ref, atol=1e-5, rtol=1e-5)

    # Also exercise a larger, non-multiple-of-128 batch to cover the padded /
    # multi-tile grid path (amortization is the caller's main lever).
    x_big = jax.random.normal(kx, (3000, input_dim), dtype=jnp.float32)
    out_big = jax.block_until_ready(nn_forward(x_big, w1, b1, w2, b2))
    ref_big = jnp.dot(jnp.tanh(jnp.dot(x_big, w1.T) + b1), w2.T) + b2
    assert out_big.shape == (3000, output_dim)
    assert jnp.allclose(out_big, ref_big, atol=1e-5, rtol=1e-5)

    print("KERNEL_OK")
</pallas_src>

<mosaic_0001>
module attributes {stable_mosaic.version = 11 : i64} {
  func.func @mlp_kernel(%arg0: i32, %arg1: memref<32x3xf32, #tpu.memory_space<vmem>>, %arg2: memref<1xf32, #tpu.memory_space<smem>>, %arg3: memref<1x128xf32, #tpu.memory_space<vmem>>, %arg4: memref<1x128xf32, #tpu.memory_space<vmem>>) attributes {dimension_semantics = [#tpu.dimension_semantics<parallel>], iteration_bounds = array<i64: 1>, scalar_prefetch = 0 : i64, scratch_operands = 0 : i64, tpu.core_type = #tpu.core_type<tc>, window_params = [{pipeline_mode = #tpu.pipeline_mode<synchronous>, transform_indices = @transform_0, window_bounds = array<i64: 32, 3>}, {transform_indices = @transform_1, window_bounds = array<i64: 1>}, {transform_indices = @transform_2, window_bounds = array<i64: 1, 128>}, {transform_indices = @transform_3, window_bounds = array<i64: 1, 128>}]} {
    %c0 = arith.constant 0 : index
    %c0_0 = arith.constant 0 : index
    %0 = vector.load %arg1[%c0, %c0_0] : memref<32x3xf32, #tpu.memory_space<vmem>>, vector<32x1xf32>
    %c0_1 = arith.constant 0 : index
    %c1 = arith.constant 1 : index
    %1 = vector.load %arg1[%c0_1, %c1] : memref<32x3xf32, #tpu.memory_space<vmem>>, vector<32x1xf32>
    %c0_2 = arith.constant 0 : index
    %c2 = arith.constant 2 : index
    %2 = vector.load %arg1[%c0_2, %c2] : memref<32x3xf32, #tpu.memory_space<vmem>>, vector<32x1xf32>
    %c0_3 = arith.constant 0 : index
    %c0_4 = arith.constant 0 : index
    %3 = vector.load %arg3[%c0_3, %c0_4] : memref<1x128xf32, #tpu.memory_space<vmem>>, vector<1x128xf32>
    %4 = vector.broadcast %0 : vector<32x1xf32> to vector<32x128xf32>
    %5 = vector.broadcast %3 : vector<1x128xf32> to vector<32x128xf32>
    %6 = arith.mulf %4, %5 : vector<32x128xf32>
    %7 = vector.broadcast %1 : vector<32x1xf32> to vector<32x128xf32>
    %8 = arith.addf %6, %7 : vector<32x128xf32>
    %9 = math.tanh %8 : vector<32x128xf32>
    %10 = vector.broadcast %2 : vector<32x1xf32> to vector<32x128xf32>
    %11 = arith.mulf %10, %9 : vector<32x128xf32>
    %cst = arith.constant dense<0.000000e+00> : vector<128xf32>
    %12 = vector.multi_reduction <add>, %11, %cst [0] : vector<32x128xf32> to vector<128xf32>
    %13 = vector.shape_cast %12 : vector<128xf32> to vector<1x128xf32>
    %c0_5 = arith.constant 0 : index
    %14 = memref.load %arg2[%c0_5] : memref<1xf32, #tpu.memory_space<smem>>
    %15 = vector.broadcast %14 : f32 to vector<1x128xf32>
    %16 = arith.addf %13, %15 : vector<1x128xf32>
    %c0_6 = arith.constant 0 : index
    %c0_7 = arith.constant 0 : index
    %17 = vector.load %arg4[%c0_6, %c0_7] : memref<1x128xf32, #tpu.memory_space<vmem>>, vector<1x128xf32>
    tpu.vector_store %arg4[%c0_6, %c0_7], %16 {strides = array<i32>} : memref<1x128xf32, #tpu.memory_space<vmem>>, vector<1x128xf32>,
    return
  }
  func.func @transform_0(%arg0: i32) -> (i32, i32) {
    %c0_i32 = arith.constant 0 : i32
    %c0_i32_0 = arith.constant 0 : i32
    %c0_i32_1 = arith.constant 0 : i32
    return %c0_i32, %c0_i32_0 : i32, i32
  }
  func.func @transform_1(%arg0: i32) -> i32 {
    %c0_i32 = arith.constant 0 : i32
    %c0_i32_0 = arith.constant 0 : i32
    return %c0_i32 : i32
  }
  func.func @transform_2(%arg0: i32) -> (i32, i32) {
    %c0_i32 = arith.constant 0 : i32
    %c0_i32_0 = arith.constant 0 : i32
    return %c0_i32, %arg0 : i32, i32
  }
  func.func @transform_3(%arg0: i32) -> (i32, i32) {
    %c0_i32 = arith.constant 0 : i32
    %c0_i32_0 = arith.constant 0 : i32
    return %c0_i32, %arg0 : i32, i32
  }
}

</mosaic_0001>

<llo_original>
// kernel: tpu_custom_call.1
$region0: #{tpu_custom_call.1}
  #allocation0 [shape = 'u32[]', space=smem, size = 0x4, offset = 0x4, fixed_abs, tag = 'smem constant byte address 0x4 - core index']
  #allocation1 [shape = 'u32[144,128]{1,0:T(1,128)}', space=vmem, size = 0x12000, scoped, tag = 'internal scratch']
  #allocation2 [shape = 'f32[1]{0:T(128)S(6)}', space=smem, size = 0x200, scoped, tag = 'scoped memory for tpu_custom_call.1']
  %s0 = inlined_call_operand.vmem [shape: f32[32,3], index: 0, kind: input, shape index: {}]
  %s1 = inlined_call_operand.<no memory space> [shape: f32[1], index: 1, kind: input, shape index: {}]
  %s2 = inlined_call_operand.vmem [shape: f32[1,128], index: 2, kind: input, shape index: {}]
  %s3 = inlined_call_operand.hbm [shape: f32[1,128], index: 3, kind: output, shape index: {}]
  %s4 = sld [smem:[#allocation0]]
  $region22: #{tpu_custom_call.1} parent=0
    _
  %s6 = ssub.s32 1, %s4
  %s7 = scalar_select 0, %s6, %s4
  %8 = sst [smem:[#allocation2]] %s1
  $region1: #{tpu_custom_call.1} parent=0
    #allocation3 [shape = 'u8[512]{0}', space=vmem, size = 0x400, scoped, tag = 'output window, operand 0, single buffered']
    #allocation4 [shape = 's32[1]{0}', space=sflag, size = 0x4, scoped, tag = 'scoped memory for tpu_custom_call.1']
    %9 = vsyncpa [#allocation4], 0
    // Predicated region
    $region2: #{tpu_custom_call.1} parent=1 // pred_check
      _
    $region3: #{tpu_custom_call.1} parent=1 // pred_check_branch
      %11 = sbr.rel (0) target = $region5
    $region4: #{tpu_custom_call.1} parent=1 // pred_region
      _
    $region5: #{tpu_custom_call.1} parent=1 // pred_fallthru
      _
    // Predicated region
    $region6: #{tpu_custom_call.1} parent=1 // pred_check
      _
    $region7: #{tpu_custom_call.1} parent=1 // pred_check_branch
      %13 = sbr.rel (0) target = $region9
    $region8: #{tpu_custom_call.1} parent=1 // pred_region
      _
    $region9: #{tpu_custom_call.1} parent=1 // pred_fallthru
      _
    // Predicated region
    $region10: #{tpu_custom_call.1} parent=1 // pred_check
      _
    $region11: #{tpu_custom_call.1} parent=1 // pred_check_branch
      %15 = sbr.rel (0) target = $region13
    $region12: #{tpu_custom_call.1} parent=1 // pred_region
      _
    $region13: #{tpu_custom_call.1} parent=1 // pred_fallthru
      _
    %v16 = vld [vmem:[%s0] sm:$0xff]
    %v17 = vld [vmem:[%s0 + $0x8] sm:$0xff]
    %v18 = vld [vmem:[%s0 + $0x10] sm:$0xff]
    %v19 = vld [vmem:[%s0 + $0x18] sm:$0xff]
    %v20 = vld [vmem:[%s2] sm:$0x1]
    %22 = vset.pattern.permute.xlu0 0
    %23 = vperm.xlu0 %22, %v16
    %v24 = vpop.permute.xlu0 %23
    %27 = vset.pattern.permute.xlu0 0
    %28 = vperm.xlu0 %27, %v17
    %v29 = vpop.permute.xlu0 %28
    %32 = vset.pattern.permute.xlu0 0
    %33 = vperm.xlu0 %32, %v18
    %v34 = vpop.permute.xlu0 %33
    %37 = vset.pattern.permute.xlu0 0
    %38 = vperm.xlu0 %37, %v19
    %v39 = vpop.permute.xlu0 %38
    %v42 = vlaneseq
    %v43 = vshrl.u32 %v42, 7
    %v44 = vsub.s32 0, %v43
    %v45 = vrot.slane %v20, %v44
    %v47 = vmul.f32 %v24, %v45
    %v48 = vmul.f32 %v29, %v45
    %v49 = vmul.f32 %v34, %v45
    %v50 = vmul.f32 %v39, %v45
    %51 = vset.pattern.permute.xlu0 1
    %52 = vperm.xlu0 %51, %v16
    %v53 = vpop.permute.xlu0 %52
    %55 = vset.pattern.permute.xlu0 1
    %56 = vperm.xlu0 %55, %v17
    %v57 = vpop.permute.xlu0 %56
    %59 = vset.pattern.permute.xlu0 1
    %60 = vperm.xlu0 %59, %v18
    %v61 = vpop.permute.xlu0 %60
    %63 = vset.pattern.permute.xlu0 1
    %64 = vperm.xlu0 %63, %v19
    %v65 = vpop.permute.xlu0 %64
    %v67 = vadd.f32 %v47, %v53
    %v68 = vadd.f32 %v48, %v57
    %v69 = vadd.f32 %v49, %v61
    %v70 = vadd.f32 %v50, %v65
    %v71 = vtanh.pop %v67
    %v72 = vtanh.pop %v68
    %v73 = vtanh.pop %v69
    %v74 = vtanh.pop %v70
    %75 = vset.pattern.permute.xlu0 2
    %76 = vperm.xlu0 %75, %v16
    %v77 = vpop.permute.xlu0 %76
    %79 = vset.pattern.permute.xlu0 2
    %80 = vperm.xlu0 %79, %v17
    %v81 = vpop.permute.xlu0 %80
    %83 = vset.pattern.permute.xlu0 2
    %84 = vperm.xlu0 %83, %v18
    %v85 = vpop.permute.xlu0 %84
    %87 = vset.pattern.permute.xlu0 2
    %88 = vperm.xlu0 %87, %v19
    %v89 = vpop.permute.xlu0 %88
    %v91 = vmul.f32 %v77, %v71
    %v92 = vmul.f32 %v81, %v72
    %v93 = vmul.f32 %v85, %v73
    %v94 = vmul.f32 %v89, %v74
    %v95 = vadd.f32 %v91, %v92
    %v96 = vadd.f32 %v95, %v93
    %v97 = vadd.f32 %v96, %v94
    %v98 = vrot.slane %v97, 4
    %v99 = vadd.f32 %v97, %v98
    %v100 = vrot.slane %v99, 2
    %v101 = vadd.f32 %v99, %v100
    %v102 = vrot.slane %v101, 1
    %v103 = vadd.f32 %v101, %v102
    %s104 = sld [smem:[#allocation2]]
    %v105 = vstv %s104
    %v106 = vadd.f32 %v103, %v105
    %107 = vst [vmem:[#allocation3] sm:$0x1] %v106
    // Predicated region
    $region14: #{tpu_custom_call.1} parent=1 // pred_check
      _
    $region15: #{tpu_custom_call.1} parent=1 // pred_check_branch
      %109 = sbr.rel (0) target = $region17
    $region16: #{tpu_custom_call.1} parent=1 // pred_region
      %s111 = ssub.s32 16, 16
      %112 = vsyncadd [#allocation4], %s111
      %s114 = sshll.u32 [#allocation3], 4
      %s115 = int_to_ptr.vmem [resolvable:$true] %s114
      %117 = dma.vmem_to_hbm [thread:$0]  %s115, 16, %s3, [#allocation4]
    $region17: #{tpu_custom_call.1} parent=1 // pred_fallthru
      _
    // Predicated region
    $region18: #{tpu_custom_call.1} parent=1 // pred_check
      _
    $region19: #{tpu_custom_call.1} parent=1 // pred_check_branch
      %119 = sbr.rel (0) target = $region21
    $region20: #{tpu_custom_call.1} parent=1 // pred_region
      %120 = dma.done [#allocation4], 16
    $region21: #{tpu_custom_call.1} parent=1 // pred_fallthru
      _
    %121 = vsyncpa [#allocation4], 1

</llo_original>
